<compile_context>
chip_gen: v6e
topology: v6e:2x2x1
jax: 0.10.0
libtpu: 0.0.40
codegen_flags: <defaults>
</compile_context>

<pallas_src>
import jax
import jax.numpy as jnp
from jax import lax
from jax.experimental import pallas as pl
from jax.experimental.pallas import tpu as pltpu

EPS = 1e-5  # nn.LayerNorm default eps


def _pick_block_b(B, max_bb=8):
    """Batch items per grid step: prefer >=4 grid steps, then >=2, then 1."""
    for min_steps in (4, 2, 1):
        for bb in range(min(B, max_bb), 0, -1):
            if B % bb == 0 and B // bb >= min_steps:
                return bb
    return 1


def _make_kernel(Lp, C_in, C_out, K, block_b):
    LEFT = (K - 1) // 2  # PyTorch padding='same', dilation=1

    def kernel(x_ref, m_ref, g1_ref, b1_ref, w1_ref, g2_ref, b2_ref,
               w2_ref, bc2_ref, wp_ref, bp_ref, out_ref):
        # Small constant operands, read once per grid step.
        g1, b1 = g1_ref[...], b1_ref[...]          # (C_in, 1)
        g2, b2 = g2_ref[...], b2_ref[...]          # (C_out, 1)
        w1 = w1_ref[...]                            # (K*C_out, C_in)
        w2 = w2_ref[...]                            # (K*C_out, C_out)
        bc2 = bc2_ref[...]                          # (C_out, 1)
        wp, bp = wp_ref[...], bp_ref[...]           # (C_out, C_in), (C_out, 1)

        def masked_layernorm(h, m, gamma, beta):
            # MaskLayerNorm1d: stats over (channels, tokens) of the *unmasked*
            # tensor; denominator = (#valid tokens) * num_channels.
            n_ch = h.shape[0]
            xsum = jnp.sum(h, keepdims=True)            # (1, 1)
            xxsum = jnp.sum(h * h, keepdims=True)       # (1, 1)
            numel = jnp.sum(m, keepdims=True) * n_ch    # (1, 1)
            xmean = xsum / numel
            var = xxsum / numel - xmean * xmean
            ratio = gamma * lax.rsqrt(jnp.maximum(var, EPS))   # EUP rsqrt
            return (h - xmean) * ratio + beta

        def swish(h):
            return h * (1.0 / (1.0 + jnp.exp(-h)))      # exp on EUP

        def shift_tokens(zt, d):
            # out[:, l] = zt[:, l + d]; out-of-range positions are zero,
            # exactly reproducing the conv's 'same' zero padding.
            if d == 0:
                return zt
            zero = jnp.zeros((zt.shape[0], abs(d)), jnp.float32)
            if d > 0:
                return jnp.concatenate([zt[:, d:], zero], axis=1)
            return jnp.concatenate([zero, zt[:, :Lp + d]], axis=1)

        def conv_same(h, w_stacked, bias):
            # One fused MXU call for all K taps (N = Lp lanes), then static
            # token shifts along the lane axis instead of a padded scratch.
            z = jnp.dot(w_stacked, h, preferred_element_type=jnp.float32)
            y = None
            for t in range(K):
                d = t - LEFT
                zt = shift_tokens(z[t * C_out:(t + 1) * C_out, :], d)
                y = zt if y is None else y + zt
            return y if bias is None else y + bias

        for bi in range(block_b):
            x = x_ref[bi]            # (C_in, Lp)  channel-major, tokens on lanes
            m = m_ref[bi]            # (1, Lp)

            # norm_1 -> mask -> swish -> conv_1 (no bias) -> mask
            h = swish(m * masked_layernorm(x, m, g1, b1))
            y = m * conv_same(h, w1, None)

            # norm_2 -> mask -> swish -> conv_2 (+bias)
            h2 = swish(m * masked_layernorm(y, m, g2, b2))
            y2 = conv_same(h2, w2, bc2)

            # 1x1 residual projection (in_channels != out_channels)
            resid = jnp.dot(wp, x, preferred_element_type=jnp.float32) + bp

            # final mask; dropout is identity in eval mode
            out_ref[bi] = (m * (y2 + resid)).astype(out_ref.dtype)

    return kernel


def m_residual_block(x_bcl, mask_bl, params, *, K, block_b=None):
    """x_bcl: (B, C_in, L) float32 (PyTorch NCL); mask_bl: (B, L) of {0,1}."""
    x_bcl = x_bcl.astype(jnp.float32)
    B, C_in, L = x_bcl.shape
    C_out = params["w1"].shape[1]          # w1: (K, C_out, C_in)
    Lp = ((L + 127) // 128) * 128          # lane-dense token axis

    if block_b is None:
        block_b = _pick_block_b(B)

    # Zero-pad tokens to Lp.  Padded tokens have mask 0 and value 0, so they
    # contribute nothing to MaskLayerNorm statistics and the convs see exactly
    # the original 'same' zero padding.
    xp = jnp.pad(x_bcl, ((0, 0), (0, 0), (0, Lp - L)))
    mp = jnp.pad(mask_bl.astype(jnp.float32), ((0, 0), (0, Lp - L)))[:, None, :]

    # Stack the K conv taps along the output-channel axis for one fused matmul.
    w1s = params["w1"].reshape(K * C_out, C_in).astype(jnp.float32)
    w2s = params["w2"].reshape(K * C_out, C_out).astype(jnp.float32)

    kernel = _make_kernel(Lp, C_in, C_out, K, block_b)

    def const(shape):
        return pl.BlockSpec(shape, lambda *_: (0,) * len(shape))

    # Explicit VMEM budget (scales with the block; clamped to a safe range).
    est = 4 * (2 * block_b * (C_in + 1 + 2 * C_out) * Lp
               + 2 * (w1s.size + w2s.size + C_in * C_out + 2 * C_in + 5 * C_out)
               + 6 * block_b * max(C_in, C_out, K * C_out) * Lp)
    vmem_limit = int(min(max(3 * est, 32 * 1024 * 1024), 96 * 1024 * 1024))

    out = pl.pallas_call(
        kernel,
        out_shape=jax.ShapeDtypeStruct((B, C_out, Lp), jnp.float32),
        grid_spec=pltpu.PrefetchScalarGridSpec(
            num_scalar_prefetch=0,
            grid=(B // block_b,),
            in_specs=[
                pl.BlockSpec((block_b, C_in, Lp), lambda b: (b, 0, 0)),   # x
                pl.BlockSpec((block_b, 1, Lp), lambda b: (b, 0, 0)),      # mask
                const((C_in, 1)),            # norm_1 weight
                const((C_in, 1)),            # norm_1 bias
                const((K * C_out, C_in)),    # conv_1 weight (taps stacked)
                const((C_out, 1)),           # norm_2 weight
                const((C_out, 1)),           # norm_2 bias
                const((K * C_out, C_out)),   # conv_2 weight (taps stacked)
                const((C_out, 1)),           # conv_2 bias
                const((C_out, C_in)),        # proj weight (1x1 conv)
                const((C_out, 1)),           # proj bias
            ],
            out_specs=pl.BlockSpec((block_b, C_out, Lp), lambda b: (b, 0, 0)),
        ),
        compiler_params=pltpu.CompilerParams(
            dimension_semantics=("parallel",),
            vmem_limit_bytes=vmem_limit),
    )(xp, mp, params["g1"], params["b1"], w1s,
      params["g2"], params["b2"], w2s, params["bc2"],
      params["wp"], params["bp"])
    return out[:, :, :L]


def reference(x_bcl, mask_bl, params, *, K):
    """Pure-JAX reference matching the PyTorch forward (eval mode), NCL layout."""
    B, C_in, L = x_bcl.shape
    m = mask_bl[:, None, :].astype(jnp.float32)
    LEFT = (K - 1) // 2
    RIGHT = K - 1 - LEFT
    hi = lax.Precision.HIGHEST

    def layernorm(h, gamma, beta):
        C = h.shape[1]
        xsum = jnp.sum(h, axis=(1, 2), keepdims=True)
        xxsum = jnp.sum(h * h, axis=(1, 2), keepdims=True)
        numel = jnp.sum(m, axis=(1, 2), keepdims=True) * C
        xmean = xsum / numel
        var = xxsum / numel - xmean * xmean
        std = jnp.sqrt(jnp.maximum(var, EPS))
        return (h - xmean) * (gamma[None] / std) + beta[None]

    def swish(h):
        return h * (1.0 / (1.0 + jnp.exp(-h)))

    def conv(h, w, bias):
        hp = jnp.pad(h, ((0, 0), (0, 0), (LEFT, RIGHT)))
        y = sum(jnp.einsum("oc,bcl->bol", w[t], hp[:, :, t:t + L], precision=hi)
                for t in range(K))
        return y if bias is None else y + bias[None]

    x = layernorm(x_bcl, params["g1"], params["b1"])
    x = swish(m * x)
    x = m * conv(x, params["w1"], None)
    x2 = layernorm(x, params["g2"], params["b2"])
    x2 = swish(m * x2)
    x2 = conv(x2, params["w2"], params["bc2"])
    resid = jnp.einsum("oc,bcl->bol", params["wp"], x_bcl, precision=hi) \
        + params["bp"][None]
    return m * (x2 + resid)


if __name__ == "__main__":
    B, L, C_in, C_out, K = 2, 16, 4, 8, 3

    key = jax.random.PRNGKey(0)
    ks = jax.random.split(key, 10)
    x = jax.random.normal(ks[0], (B, C_in, L), jnp.float32)       # NCL layout
    lengths = jnp.array([12, 7])
    mask = (jnp.arange(L)[None, :] < lengths[:, None]).astype(jnp.float32)

    params = {
        "g1": 1.0 + 0.1 * jax.random.normal(ks[1], (C_in, 1), jnp.float32),
        "b1": 0.1 * jax.random.normal(ks[2], (C_in, 1), jnp.float32),
        "w1": 0.3 * jax.random.normal(ks[3], (K, C_out, C_in), jnp.float32),
        "g2": 1.0 + 0.1 * jax.random.normal(ks[4], (C_out, 1), jnp.float32),
        "b2": 0.1 * jax.random.normal(ks[5], (C_out, 1), jnp.float32),
        "w2": 0.3 * jax.random.normal(ks[6], (K, C_out, C_out), jnp.float32),
        "bc2": 0.1 * jax.random.normal(ks[7], (C_out, 1), jnp.float32),
        "wp": 0.3 * jax.random.normal(ks[8], (C_out, C_in), jnp.float32),
        "bp": 0.1 * jax.random.normal(ks[9], (C_out, 1), jnp.float32),
    }

    out = m_residual_block(x, mask, params, K=K)
    out = jax.block_until_ready(out)
    assert out.shape == (B, C_out, L)

    ref = reference(x, mask, params, K=K)
    err = float(jnp.max(jnp.abs(out - ref)))
    assert err < 2e-3, f"max abs err {err}"
    print("KERNEL_OK")
</pallas_src>

<mosaic_0001>
module attributes {stable_mosaic.version = 11 : i64} {
  func.func @kernel(%arg0: i32, %arg1: memref<1x4x128xf32, #tpu.memory_space<vmem>>, %arg2: memref<1x1x128xf32, #tpu.memory_space<vmem>>, %arg3: memref<4x1xf32, #tpu.memory_space<vmem>>, %arg4: memref<4x1xf32, #tpu.memory_space<vmem>>, %arg5: memref<24x4xf32, #tpu.memory_space<vmem>>, %arg6: memref<8x1xf32, #tpu.memory_space<vmem>>, %arg7: memref<8x1xf32, #tpu.memory_space<vmem>>, %arg8: memref<24x8xf32, #tpu.memory_space<vmem>>, %arg9: memref<8x1xf32, #tpu.memory_space<vmem>>, %arg10: memref<8x4xf32, #tpu.memory_space<vmem>>, %arg11: memref<8x1xf32, #tpu.memory_space<vmem>>, %arg12: memref<1x8x128xf32, #tpu.memory_space<vmem>>) attributes {dimension_semantics = [#tpu.dimension_semantics<parallel>], iteration_bounds = array<i64: 2>, scalar_prefetch = 0 : i64, scratch_operands = 0 : i64, tpu.core_type = #tpu.core_type<tc>, window_params = [{transform_indices = @transform_0, window_bounds = array<i64: 1, 4, 128>}, {transform_indices = @transform_1, window_bounds = array<i64: 1, 1, 128>}, {pipeline_mode = #tpu.pipeline_mode<synchronous>, transform_indices = @transform_2, window_bounds = array<i64: 4, 1>}, {pipeline_mode = #tpu.pipeline_mode<synchronous>, transform_indices = @transform_3, window_bounds = array<i64: 4, 1>}, {pipeline_mode = #tpu.pipeline_mode<synchronous>, transform_indices = @transform_4, window_bounds = array<i64: 24, 4>}, {pipeline_mode = #tpu.pipeline_mode<synchronous>, transform_indices = @transform_5, window_bounds = array<i64: 8, 1>}, {pipeline_mode = #tpu.pipeline_mode<synchronous>, transform_indices = @transform_6, window_bounds = array<i64: 8, 1>}, {pipeline_mode = #tpu.pipeline_mode<synchronous>, transform_indices = @transform_7, window_bounds = array<i64: 24, 8>}, {pipeline_mode = #tpu.pipeline_mode<synchronous>, transform_indices = @transform_8, window_bounds = array<i64: 8, 1>}, {pipeline_mode = #tpu.pipeline_mode<synchronous>, transform_indices = @transform_9, window_bounds = array<i64: 8, 4>}, {pipeline_mode = #tpu.pipeline_mode<synchronous>, transform_indices = @transform_10, window_bounds = array<i64: 8, 1>}, {transform_indices = @transform_11, window_bounds = array<i64: 1, 8, 128>}]} {
    %c0 = arith.constant 0 : index
    %c0_0 = arith.constant 0 : index
    %0 = vector.load %arg3[%c0, %c0_0] : memref<4x1xf32, #tpu.memory_space<vmem>>, vector<4x1xf32>
    %c0_1 = arith.constant 0 : index
    %c0_2 = arith.constant 0 : index
    %1 = vector.load %arg4[%c0_1, %c0_2] : memref<4x1xf32, #tpu.memory_space<vmem>>, vector<4x1xf32>
    %c0_3 = arith.constant 0 : index
    %c0_4 = arith.constant 0 : index
    %2 = vector.load %arg6[%c0_3, %c0_4] : memref<8x1xf32, #tpu.memory_space<vmem>>, vector<8x1xf32>
    %c0_5 = arith.constant 0 : index
    %c0_6 = arith.constant 0 : index
    %3 = vector.load %arg7[%c0_5, %c0_6] : memref<8x1xf32, #tpu.memory_space<vmem>>, vector<8x1xf32>
    %c0_7 = arith.constant 0 : index
    %c0_8 = arith.constant 0 : index
    %4 = vector.load %arg5[%c0_7, %c0_8] : memref<24x4xf32, #tpu.memory_space<vmem>>, vector<24x4xf32>
    %c0_9 = arith.constant 0 : index
    %c0_10 = arith.constant 0 : index
    %5 = vector.load %arg8[%c0_9, %c0_10] : memref<24x8xf32, #tpu.memory_space<vmem>>, vector<24x8xf32>
    %c0_11 = arith.constant 0 : index
    %c0_12 = arith.constant 0 : index
    %6 = vector.load %arg9[%c0_11, %c0_12] : memref<8x1xf32, #tpu.memory_space<vmem>>, vector<8x1xf32>
    %c0_13 = arith.constant 0 : index
    %c0_14 = arith.constant 0 : index
    %7 = vector.load %arg10[%c0_13, %c0_14] : memref<8x4xf32, #tpu.memory_space<vmem>>, vector<8x4xf32>
    %c0_15 = arith.constant 0 : index
    %c0_16 = arith.constant 0 : index
    %8 = vector.load %arg11[%c0_15, %c0_16] : memref<8x1xf32, #tpu.memory_space<vmem>>, vector<8x1xf32>
    %c0_17 = arith.constant 0 : index
    %c0_18 = arith.constant 0 : index
    %c0_19 = arith.constant 0 : index
    %9 = vector.load %arg1[%c0_17, %c0_18, %c0_19] : memref<1x4x128xf32, #tpu.memory_space<vmem>>, vector<1x4x128xf32>
    %10 = vector.shape_cast %9 : vector<1x4x128xf32> to vector<4x128xf32>
    %c0_20 = arith.constant 0 : index
    %c0_21 = arith.constant 0 : index
    %c0_22 = arith.constant 0 : index
    %11 = vector.load %arg2[%c0_20, %c0_21, %c0_22] : memref<1x1x128xf32, #tpu.memory_space<vmem>>, vector<1x1x128xf32>
    %12 = vector.shape_cast %11 : vector<1x1x128xf32> to vector<1x128xf32>
    %13 = vector.shape_cast %10 : vector<4x128xf32> to vector<1x4x128xf32>
    %cst = arith.constant dense<0.000000e+00> : vector<1xf32>
    %14 = vector.multi_reduction <add>, %13, %cst [1, 2] : vector<1x4x128xf32> to vector<1xf32>
    %15 = vector.shape_cast %14 : vector<1xf32> to vector<1x1x1xf32>
    %16 = vector.extract %15[0, 0, 0] : f32 from vector<1x1x1xf32>
    %17 = vector.broadcast %16 : f32 to vector<1x1xf32>
    %18 = arith.mulf %10, %10 : vector<4x128xf32>
    %19 = vector.shape_cast %18 : vector<4x128xf32> to vector<1x4x128xf32>
    %cst_23 = arith.constant dense<0.000000e+00> : vector<1xf32>
    %20 = vector.multi_reduction <add>, %19, %cst_23 [1, 2] : vector<1x4x128xf32> to vector<1xf32>
    %21 = vector.shape_cast %20 : vector<1xf32> to vector<1x1x1xf32>
    %22 = vector.extract %21[0, 0, 0] : f32 from vector<1x1x1xf32>
    %23 = vector.broadcast %22 : f32 to vector<1x1xf32>
    %24 = vector.shape_cast %12 : vector<1x128xf32> to vector<1x1x128xf32>
    %cst_24 = arith.constant dense<0.000000e+00> : vector<1xf32>
    %25 = vector.multi_reduction <add>, %24, %cst_24 [1, 2] : vector<1x1x128xf32> to vector<1xf32>
    %26 = vector.shape_cast %25 : vector<1xf32> to vector<1x1x1xf32>
    %27 = vector.extract %26[0, 0, 0] : f32 from vector<1x1x1xf32>
    %28 = vector.broadcast %27 : f32 to vector<1x1xf32>
    %cst_25 = arith.constant 4.000000e+00 : f32
    %29 = vector.broadcast %cst_25 : f32 to vector<1x1xf32>
    %30 = arith.mulf %28, %29 : vector<1x1xf32>
    %31 = arith.divf %17, %30 : vector<1x1xf32>
    %32 = arith.divf %23, %30 : vector<1x1xf32>
    %33 = arith.mulf %31, %31 : vector<1x1xf32>
    %34 = arith.subf %32, %33 : vector<1x1xf32>
    %cst_26 = arith.constant 9.99999974E-6 : f32
    %35 = vector.broadcast %cst_26 : f32 to vector<1x1xf32>
    %36 = arith.maximumf %34, %35 : vector<1x1xf32>
    %37 = math.rsqrt %36 : vector<1x1xf32>
    %38 = vector.broadcast %37 : vector<1x1xf32> to vector<4x1xf32>
    %39 = arith.mulf %0, %38 : vector<4x1xf32>
    %40 = vector.broadcast %31 : vector<1x1xf32> to vector<4x128xf32>
    %41 = arith.subf %10, %40 : vector<4x128xf32>
    %42 = vector.broadcast %39 : vector<4x1xf32> to vector<4x128xf32>
    %43 = arith.mulf %41, %42 : vector<4x128xf32>
    %44 = vector.broadcast %1 : vector<4x1xf32> to vector<4x128xf32>
    %45 = arith.addf %43, %44 : vector<4x128xf32>
    %46 = vector.broadcast %12 : vector<1x128xf32> to vector<4x128xf32>
    %47 = arith.mulf %46, %45 : vector<4x128xf32>
    %cst_27 = arith.constant 0.000000e+00 : f32
    %48 = vector.broadcast %cst_27 : f32 to vector<4x128xf32>
    %49 = arith.subf %48, %47 : vector<4x128xf32>
    %50 = math.exp %49 : vector<4x128xf32>
    %cst_28 = arith.constant 1.000000e+00 : f32
    %51 = vector.broadcast %cst_28 : f32 to vector<4x128xf32>
    %52 = arith.addf %51, %50 : vector<4x128xf32>
    %cst_29 = arith.constant 1.000000e+00 : f32
    %53 = vector.broadcast %cst_29 : f32 to vector<4x128xf32>
    %54 = arith.divf %53, %52 : vector<4x128xf32>
    %55 = arith.mulf %47, %54 : vector<4x128xf32>
    %cst_30 = arith.constant dense<0.000000e+00> : vector<24x128xf32>
    %56 = tpu.matmul %4, %55, %cst_30 {dimension_numbers = #tpu.dot_dimension_numbers<[1], [0], [0], [1], [0, 0, 1, 1], [], []>} : vector<24x4xf32>, vector<4x128xf32>, vector<24x128xf32> -> vector<24x128xf32>
    %57 = vector.extract_strided_slice %56 {offsets = [0, 0], sizes = [8, 128], strides = [1, 1]} : vector<24x128xf32> to vector<8x128xf32>
    %cst_31 = arith.constant 0.000000e+00 : f32
    %58 = vector.broadcast %cst_31 : f32 to vector<8x1xf32>
    %59 = vector.extract_strided_slice %57 {offsets = [0, 0], sizes = [8, 127], strides = [1, 1]} : vector<8x128xf32> to vector<8x127xf32>
    %60 = tpu.concatenate %58, %59 in 1 : vector<8x1xf32>, vector<8x127xf32> -> vector<8x128xf32>
    %61 = vector.extract_strided_slice %56 {offsets = [8, 0], sizes = [8, 128], strides = [1, 1]} : vector<24x128xf32> to vector<8x128xf32>
    %62 = arith.addf %60, %61 : vector<8x128xf32>
    %63 = vector.extract_strided_slice %56 {offsets = [16, 0], sizes = [8, 128], strides = [1, 1]} : vector<24x128xf32> to vector<8x128xf32>
    %cst_32 = arith.constant 0.000000e+00 : f32
    %64 = vector.broadcast %cst_32 : f32 to vector<8x1xf32>
    %65 = vector.extract_strided_slice %63 {offsets = [0, 1], sizes = [8, 127], strides = [1, 1]} : vector<8x128xf32> to vector<8x127xf32>
    %66 = tpu.concatenate %65, %64 in 1 : vector<8x127xf32>, vector<8x1xf32> -> vector<8x128xf32>
    %67 = arith.addf %62, %66 : vector<8x128xf32>
    %68 = vector.broadcast %12 : vector<1x128xf32> to vector<8x128xf32>
    %69 = arith.mulf %68, %67 : vector<8x128xf32>
    %70 = vector.shape_cast %69 : vector<8x128xf32> to vector<1x8x128xf32>
    %cst_33 = arith.constant dense<0.000000e+00> : vector<1xf32>
    %71 = vector.multi_reduction <add>, %70, %cst_33 [1, 2] : vector<1x8x128xf32> to vector<1xf32>
    %72 = vector.shape_cast %71 : vector<1xf32> to vector<1x1x1xf32>
    %73 = vector.extract %72[0, 0, 0] : f32 from vector<1x1x1xf32>
    %74 = vector.broadcast %73 : f32 to vector<1x1xf32>
    %75 = arith.mulf %69, %69 : vector<8x128xf32>
    %76 = vector.shape_cast %75 : vector<8x128xf32> to vector<1x8x128xf32>
    %cst_34 = arith.constant dense<0.000000e+00> : vector<1xf32>
    %77 = vector.multi_reduction <add>, %76, %cst_34 [1, 2] : vector<1x8x128xf32> to vector<1xf32>
    %78 = vector.shape_cast %77 : vector<1xf32> to vector<1x1x1xf32>
    %79 = vector.extract %78[0, 0, 0] : f32 from vector<1x1x1xf32>
    %80 = vector.broadcast %79 : f32 to vector<1x1xf32>
    %81 = vector.shape_cast %12 : vector<1x128xf32> to vector<1x1x128xf32>
    %cst_35 = arith.constant dense<0.000000e+00> : vector<1xf32>
    %82 = vector.multi_reduction <add>, %81, %cst_35 [1, 2] : vector<1x1x128xf32> to vector<1xf32>
    %83 = vector.shape_cast %82 : vector<1xf32> to vector<1x1x1xf32>
    %84 = vector.extract %83[0, 0, 0] : f32 from vector<1x1x1xf32>
    %85 = vector.broadcast %84 : f32 to vector<1x1xf32>
    %cst_36 = arith.constant 8.000000e+00 : f32
    %86 = vector.broadcast %cst_36 : f32 to vector<1x1xf32>
    %87 = arith.mulf %85, %86 : vector<1x1xf32>
    %88 = arith.divf %74, %87 : vector<1x1xf32>
    %89 = arith.divf %80, %87 : vector<1x1xf32>
    %90 = arith.mulf %88, %88 : vector<1x1xf32>
    %91 = arith.subf %89, %90 : vector<1x1xf32>
    %cst_37 = arith.constant 9.99999974E-6 : f32
    %92 = vector.broadcast %cst_37 : f32 to vector<1x1xf32>
    %93 = arith.maximumf %91, %92 : vector<1x1xf32>
    %94 = math.rsqrt %93 : vector<1x1xf32>
    %95 = vector.broadcast %94 : vector<1x1xf32> to vector<8x1xf32>
    %96 = arith.mulf %2, %95 : vector<8x1xf32>
    %97 = vector.broadcast %88 : vector<1x1xf32> to vector<8x128xf32>
    %98 = arith.subf %69, %97 : vector<8x128xf32>
    %99 = vector.broadcast %96 : vector<8x1xf32> to vector<8x128xf32>
    %100 = arith.mulf %98, %99 : vector<8x128xf32>
    %101 = vector.broadcast %3 : vector<8x1xf32> to vector<8x128xf32>
    %102 = arith.addf %100, %101 : vector<8x128xf32>
    %103 = vector.broadcast %12 : vector<1x128xf32> to vector<8x128xf32>
    %104 = arith.mulf %103, %102 : vector<8x128xf32>
    %cst_38 = arith.constant 0.000000e+00 : f32
    %105 = vector.broadcast %cst_38 : f32 to vector<8x128xf32>
    %106 = arith.subf %105, %104 : vector<8x128xf32>
    %107 = math.exp %106 : vector<8x128xf32>
    %cst_39 = arith.constant 1.000000e+00 : f32
    %108 = vector.broadcast %cst_39 : f32 to vector<8x128xf32>
    %109 = arith.addf %108, %107 : vector<8x128xf32>
    %cst_40 = arith.constant 1.000000e+00 : f32
    %110 = vector.broadcast %cst_40 : f32 to vector<8x128xf32>
    %111 = arith.divf %110, %109 : vector<8x128xf32>
    %112 = arith.mulf %104, %111 : vector<8x128xf32>
    %cst_41 = arith.constant dense<0.000000e+00> : vector<24x128xf32>
    %113 = tpu.matmul %5, %112, %cst_41 {dimension_numbers = #tpu.dot_dimension_numbers<[1], [0], [0], [1], [0, 0, 1, 1], [], []>} : vector<24x8xf32>, vector<8x128xf32>, vector<24x128xf32> -> vector<24x128xf32>
    %114 = vector.extract_strided_slice %113 {offsets = [0, 0], sizes = [8, 128], strides = [1, 1]} : vector<24x128xf32> to vector<8x128xf32>
    %cst_42 = arith.constant 0.000000e+00 : f32
    %115 = vector.broadcast %cst_42 : f32 to vector<8x1xf32>
    %116 = vector.extract_strided_slice %114 {offsets = [0, 0], sizes = [8, 127], strides = [1, 1]} : vector<8x128xf32> to vector<8x127xf32>
    %117 = tpu.concatenate %115, %116 in 1 : vector<8x1xf32>, vector<8x127xf32> -> vector<8x128xf32>
    %118 = vector.extract_strided_slice %113 {offsets = [8, 0], sizes = [8, 128], strides = [1, 1]} : vector<24x128xf32> to vector<8x128xf32>
    %119 = arith.addf %117, %118 : vector<8x128xf32>
    %120 = vector.extract_strided_slice %113 {offsets = [16, 0], sizes = [8, 128], strides = [1, 1]} : vector<24x128xf32> to vector<8x128xf32>
    %cst_43 = arith.constant 0.000000e+00 : f32
    %121 = vector.broadcast %cst_43 : f32 to vector<8x1xf32>
    %122 = vector.extract_strided_slice %120 {offsets = [0, 1], sizes = [8, 127], strides = [1, 1]} : vector<8x128xf32> to vector<8x127xf32>
    %123 = tpu.concatenate %122, %121 in 1 : vector<8x127xf32>, vector<8x1xf32> -> vector<8x128xf32>
    %124 = arith.addf %119, %123 : vector<8x128xf32>
    %125 = vector.broadcast %6 : vector<8x1xf32> to vector<8x128xf32>
    %126 = arith.addf %124, %125 : vector<8x128xf32>
    %cst_44 = arith.constant dense<0.000000e+00> : vector<8x128xf32>
    %127 = tpu.matmul %7, %10, %cst_44 {dimension_numbers = #tpu.dot_dimension_numbers<[1], [0], [0], [1], [0, 0, 1, 1], [], []>} : vector<8x4xf32>, vector<4x128xf32>, vector<8x128xf32> -> vector<8x128xf32>
    %128 = vector.broadcast %8 : vector<8x1xf32> to vector<8x128xf32>
    %129 = arith.addf %127, %128 : vector<8x128xf32>
    %130 = arith.addf %126, %129 : vector<8x128xf32>
    %131 = vector.broadcast %12 : vector<1x128xf32> to vector<8x128xf32>
    %132 = arith.mulf %131, %130 : vector<8x128xf32>
    %c0_45 = arith.constant 0 : index
    %c0_46 = arith.constant 0 : index
    %c0_47 = arith.constant 0 : index
    %133 = vector.load %arg12[%c0_45, %c0_46, %c0_47] : memref<1x8x128xf32, #tpu.memory_space<vmem>>, vector<1x8x128xf32>
    %134 = vector.shape_cast %133 : vector<1x8x128xf32> to vector<8x128xf32>
    %135 = vector.shape_cast %132 : vector<8x128xf32> to vector<1x8x128xf32>
    tpu.vector_store %arg12[%c0_45, %c0_46, %c0_47], %135 {strides = array<i32>} : memref<1x8x128xf32, #tpu.memory_space<vmem>>, vector<1x8x128xf32>,
    return
  }
  func.func @transform_0(%arg0: i32) -> (i32, i32, i32) {
    %c0_i32 = arith.constant 0 : i32
    %c0_i32_0 = arith.constant 0 : i32
    %c0_i32_1 = arith.constant 0 : i32
    return %arg0, %c0_i32, %c0_i32_0 : i32, i32, i32
  }
  func.func @transform_1(%arg0: i32) -> (i32, i32, i32) {
    %c0_i32 = arith.constant 0 : i32
    %c0_i32_0 = arith.constant 0 : i32
    %c0_i32_1 = arith.constant 0 : i32
    return %arg0, %c0_i32, %c0_i32_0 : i32, i32, i32
  }
  func.func @transform_2(%arg0: i32) -> (i32, i32) {
    %c0_i32 = arith.constant 0 : i32
    %c0_i32_0 = arith.constant 0 : i32
    %c0_i32_1 = arith.constant 0 : i32
    return %c0_i32, %c0_i32_0 : i32, i32
  }
  func.func @transform_3(%arg0: i32) -> (i32, i32) {
    %c0_i32 = arith.constant 0 : i32
    %c0_i32_0 = arith.constant 0 : i32
    %c0_i32_1 = arith.constant 0 : i32
    return %c0_i32, %c0_i32_0 : i32, i32
  }
  func.func @transform_4(%arg0: i32) -> (i32, i32) {
    %c0_i32 = arith.constant 0 : i32
    %c0_i32_0 = arith.constant 0 : i32
    %c0_i32_1 = arith.constant 0 : i32
    return %c0_i32, %c0_i32_0 : i32, i32
  }
  func.func @transform_5(%arg0: i32) -> (i32, i32) {
    %c0_i32 = arith.constant 0 : i32
    %c0_i32_0 = arith.constant 0 : i32
    %c0_i32_1 = arith.constant 0 : i32
    return %c0_i32, %c0_i32_0 : i32, i32
  }
  func.func @transform_6(%arg0: i32) -> (i32, i32) {
    %c0_i32 = arith.constant 0 : i32
    %c0_i32_0 = arith.constant 0 : i32
    %c0_i32_1 = arith.constant 0 : i32
    return %c0_i32, %c0_i32_0 : i32, i32
  }
  func.func @transform_7(%arg0: i32) -> (i32, i32) {
    %c0_i32 = arith.constant 0 : i32
    %c0_i32_0 = arith.constant 0 : i32
    %c0_i32_1 = arith.constant 0 : i32
    return %c0_i32, %c0_i32_0 : i32, i32
  }
  func.func @transform_8(%arg0: i32) -> (i32, i32) {
    %c0_i32 = arith.constant 0 : i32
    %c0_i32_0 = arith.constant 0 : i32
    %c0_i32_1 = arith.constant 0 : i32
    return %c0_i32, %c0_i32_0 : i32, i32
  }
  func.func @transform_9(%arg0: i32) -> (i32, i32) {
    %c0_i32 = arith.constant 0 : i32
    %c0_i32_0 = arith.constant 0 : i32
    %c0_i32_1 = arith.constant 0 : i32
    return %c0_i32, %c0_i32_0 : i32, i32
  }
  func.func @transform_10(%arg0: i32) -> (i32, i32) {
    %c0_i32 = arith.constant 0 : i32
    %c0_i32_0 = arith.constant 0 : i32
    %c0_i32_1 = arith.constant 0 : i32
    return %c0_i32, %c0_i32_0 : i32, i32
  }
  func.func @transform_11(%arg0: i32) -> (i32, i32, i32) {
    %c0_i32 = arith.constant 0 : i32
    %c0_i32_0 = arith.constant 0 : i32
    %c0_i32_1 = arith.constant 0 : i32
    return %arg0, %c0_i32, %c0_i32_0 : i32, i32, i32
  }
}

</mosaic_0001>

<llo_original>
// kernel: tpu_custom_call.1
$region0: #{tpu_custom_call.1}
  #allocation0 [shape = 'u32[]', space=smem, size = 0x4, offset = 0x4, fixed_abs, tag = 'smem constant byte address 0x4 - core index']
  #allocation1 [shape = 'u32[144,128]{1,0:T(1,128)}', space=vmem, size = 0x12000, scoped, tag = 'internal scratch']
  %s0 = inlined_call_operand.vmem [shape: f32[2,4,128], index: 0, kind: input, shape index: {}]
  %s1 = inlined_call_operand.vmem [shape: f32[2,1,128], index: 1, kind: input, shape index: {}]
  %s2 = inlined_call_operand.vmem [shape: f32[4,1], index: 2, kind: input, shape index: {}]
  %s3 = inlined_call_operand.vmem [shape: f32[4,1], index: 3, kind: input, shape index: {}]
  %s4 = inlined_call_operand.vmem [shape: f32[24,4], index: 4, kind: input, shape index: {}]
  %s5 = inlined_call_operand.vmem [shape: f32[8,1], index: 5, kind: input, shape index: {}]
  %s6 = inlined_call_operand.vmem [shape: f32[8,1], index: 6, kind: input, shape index: {}]
  %s7 = inlined_call_operand.vmem [shape: f32[24,8], index: 7, kind: input, shape index: {}]
  %s8 = inlined_call_operand.vmem [shape: f32[8,1], index: 8, kind: input, shape index: {}]
  %s9 = inlined_call_operand.vmem [shape: f32[8,4], index: 9, kind: input, shape index: {}]
  %s10 = inlined_call_operand.vmem [shape: f32[8,1], index: 10, kind: input, shape index: {}]
  %s11 = inlined_call_operand.hbm [shape: f32[2,8,128], index: 11, kind: output, shape index: {}]
  %s12 = sld [smem:[#allocation0]]
  $region77: #{tpu_custom_call.1} parent=0
    _
  %s14 = ssub.s32 1, %s12
  %s15 = scalar_select 0, %s14, %s12
  $region1: #{tpu_custom_call.1} parent=0
    #allocation2 [shape = 'u8[8192]{0}', space=vmem, size = 0x2000, scoped, tag = 'output window, operand 0']
    #allocation3 [shape = 's32[2]{0}', space=sflag, size = 0x8, scoped, tag = 'scoped memory for tpu_custom_call.1']
    %16 = vsyncpa [#allocation3], 0
    %s17 = scalar_lea.sflag [#allocation3], 1
    %18 = vsyncpa %s17, 0
    loop: start=0, step=1, limit=4
    $region2: #{tpu_custom_call.1} parent=1 // loop_pre_header
      _
    $region3: #{tpu_custom_call.1} parent=1 // loop_header
      %s20 = sphi 0, %s24
      %p21 = scmp.ge.s32.totalorder %s20, 4
      %s30 = sphi 0, %s32
      %s33 = sphi 0, %s30
      %s34 = sphi 0, %s33
      %s50 = sphi 0, %s34
      %s56 = sphi 0, %s58
      %s59 = sphi 0, %s56
      %s60 = sphi 0, %s59
      %s76 = sphi 0, %s60
      %s80 = sphi 0, %s80
      %s82 = sphi 0, %s80
      %s83 = sphi 0, %s82
      %s97 = sphi 0, %s83
      %s101 = sphi 0, %s101
      %s103 = sphi 0, %s101
      %s104 = sphi 0, %s103
      %s118 = sphi 0, %s104
      %s122 = sphi 0, %s122
      %s124 = sphi 0, %s122
      %s125 = sphi 0, %s124
      %s139 = sphi 0, %s125
      %s143 = sphi 0, %s143
      %s145 = sphi 0, %s143
      %s146 = sphi 0, %s145
      %s160 = sphi 0, %s146
      %s164 = sphi 0, %s164
      %s166 = sphi 0, %s164
      %s167 = sphi 0, %s166
      %s181 = sphi 0, %s167
      %s185 = sphi 0, %s185
      %s187 = sphi 0, %s185
      %s188 = sphi 0, %s187
      %s202 = sphi 0, %s188
      %s206 = sphi 0, %s206
      %s208 = sphi 0, %s206
      %s209 = sphi 0, %s208
      %s223 = sphi 0, %s209
      %s227 = sphi 0, %s227
      %s229 = sphi 0, %s227
      %s230 = sphi 0, %s229
      %s244 = sphi 0, %s230
      %s248 = sphi 0, %s248
      %s250 = sphi 0, %s248
      %s251 = sphi 0, %s250
      %s265 = sphi 0, %s251
      %s271 = sphi 0, %s273
      %s274 = sphi 0, %s271
      %s275 = sphi 0, %s274
      %s291 = sphi 0, %s275
    $region4: #{tpu_custom_call.1} parent=1 // loop_header_branch
      %23 = sbr.rel (%p21) target = $region8
    $region5: #{tpu_custom_call.1} parent=1 // loop_body
      %s25 = ssub.s32 %s20, 1
      %s26 = ssub.s32 %s20, 2
      %s27 = sadd.s32 %s20, 1
      %s28 = ssub.s32 %s20, %s27
      %p29 = scmp.eq.s32.totalorder %s28, 0
      %s31 = sadd.s32 %s30, 1
      %s32 = scalar_select %p29, %s30, %s31
      %p35 = pneg %p29
      %p36 = scmp.eq.s32.totalorder %s20, 1
      %p37 = por %p35, %p36
      %p38 = scmp.ne.s32.totalorder %s30, %s33
      %p39 = scmp.eq.s32.totalorder %s20, 0
      %p40 = por %p38, %p39
      %p41 = scmp.ne.s32.totalorder %s30, %s33
      %p42 = scmp.eq.s32.totalorder %s25, 1
      %p43 = por %p41, %p42
      %p44 = scmp.ne.s32.totalorder %s33, %s34
      %p45 = scmp.eq.s32.totalorder %s25, 0
      %p46 = por %p44, %p45
      %p47 = scmp.ne.s32.totalorder %s33, %s34
      %p48 = scmp.eq.s32.totalorder %s26, 1
      %p49 = por %p47, %p48
      %p51 = scmp.ne.s32.totalorder %s34, %s50
      %p52 = scmp.eq.s32.totalorder %s26, 0
      %p53 = por %p51, %p52
      %s54 = ssub.s32 %s20, %s27
      %p55 = scmp.eq.s32.totalorder %s54, 0
      %s57 = sadd.s32 %s56, 1
      %s58 = scalar_select %p55, %s56, %s57
      %p61 = pneg %p55
      %p62 = scmp.eq.s32.totalorder %s20, 1
      %p63 = por %p61, %p62
      %p64 = scmp.ne.s32.totalorder %s56, %s59
      %p65 = scmp.eq.s32.totalorder %s20, 0
      %p66 = por %p64, %p65
      %p67 = scmp.ne.s32.totalorder %s56, %s59
      %p68 = scmp.eq.s32.totalorder %s25, 1
      %p69 = por %p67, %p68
      %p70 = scmp.ne.s32.totalorder %s59, %s60
      %p71 = scmp.eq.s32.totalorder %s25, 0
      %p72 = por %p70, %p71
      %p73 = scmp.ne.s32.totalorder %s59, %s60
      %p74 = scmp.eq.s32.totalorder %s26, 1
      %p75 = por %p73, %p74
      %p77 = scmp.ne.s32.totalorder %s60, %s76
      %p78 = scmp.eq.s32.totalorder %s26, 0
      %p79 = por %p77, %p78
      %s81 = sadd.s32 %s80, 1
      %p84 = scmp.eq.s32.totalorder %s20, 1
      %p85 = scmp.ne.s32.totalorder %s80, %s82
      %p86 = scmp.eq.s32.totalorder %s20, 0
      %p87 = por %p85, %p86
      %p88 = scmp.ne.s32.totalorder %s80, %s82
      %p89 = scmp.eq.s32.totalorder %s25, 1
      %p90 = por %p88, %p89
      %p91 = scmp.ne.s32.totalorder %s82, %s83
      %p92 = scmp.eq.s32.totalorder %s25, 0
      %p93 = por %p91, %p92
      %p94 = scmp.ne.s32.totalorder %s82, %s83
      %p95 = scmp.eq.s32.totalorder %s26, 1
      %p96 = por %p94, %p95
      %p98 = scmp.ne.s32.totalorder %s83, %s97
      %p99 = scmp.eq.s32.totalorder %s26, 0
      %p100 = por %p98, %p99
      %s102 = sadd.s32 %s101, 1
      %p105 = scmp.eq.s32.totalorder %s20, 1
      %p106 = scmp.ne.s32.totalorder %s101, %s103
      %p107 = scmp.eq.s32.totalorder %s20, 0
      %p108 = por %p106, %p107
      %p109 = scmp.ne.s32.totalorder %s101, %s103
      %p110 = scmp.eq.s32.totalorder %s25, 1
      %p111 = por %p109, %p110
      %p112 = scmp.ne.s32.totalorder %s103, %s104
      %p113 = scmp.eq.s32.totalorder %s25, 0
      %p114 = por %p112, %p113
      %p115 = scmp.ne.s32.totalorder %s103, %s104
      %p116 = scmp.eq.s32.totalorder %s26, 1
      %p117 = por %p115, %p116
      %p119 = scmp.ne.s32.totalorder %s104, %s118
      %p120 = scmp.eq.s32.totalorder %s26, 0
      %p121 = por %p119, %p120
      %s123 = sadd.s32 %s122, 1
      %p126 = scmp.eq.s32.totalorder %s20, 1
      %p127 = scmp.ne.s32.totalorder %s122, %s124
      %p128 = scmp.eq.s32.totalorder %s20, 0
      %p129 = por %p127, %p128
      %p130 = scmp.ne.s32.totalorder %s122, %s124
      %p131 = scmp.eq.s32.totalorder %s25, 1
      %p132 = por %p130, %p131
      %p133 = scmp.ne.s32.totalorder %s124, %s125
      %p134 = scmp.eq.s32.totalorder %s25, 0
      %p135 = por %p133, %p134
      %p136 = scmp.ne.s32.totalorder %s124, %s125
      %p137 = scmp.eq.s32.totalorder %s26, 1
      %p138 = por %p136, %p137
      %p140 = scmp.ne.s32.totalorder %s125, %s139
      %p141 = scmp.eq.s32.totalorder %s26, 0
      %p142 = por %p140, %p141
      %s144 = sadd.s32 %s143, 1
      %p147 = scmp.eq.s32.totalorder %s20, 1
      %p148 = scmp.ne.s32.totalorder %s143, %s145
      %p149 = scmp.eq.s32.totalorder %s20, 0
      %p150 = por %p148, %p149
      %p151 = scmp.ne.s32.totalorder %s143, %s145
      %p152 = scmp.eq.s32.totalorder %s25, 1
      %p153 = por %p151, %p152
      %p154 = scmp.ne.s32.totalorder %s145, %s146
      %p155 = scmp.eq.s32.totalorder %s25, 0
      %p156 = por %p154, %p155
      %p157 = scmp.ne.s32.totalorder %s145, %s146
      %p158 = scmp.eq.s32.totalorder %s26, 1
      %p159 = por %p157, %p158
      %p161 = scmp.ne.s32.totalorder %s146, %s160
      %p162 = scmp.eq.s32.totalorder %s26, 0
      %p163 = por %p161, %p162
      %s165 = sadd.s32 %s164, 1
      %p168 = scmp.eq.s32.totalorder %s20, 1
      %p169 = scmp.ne.s32.totalorder %s164, %s166
      %p170 = scmp.eq.s32.totalorder %s20, 0
      %p171 = por %p169, %p170
      %p172 = scmp.ne.s32.totalorder %s164, %s166
      %p173 = scmp.eq.s32.totalorder %s25, 1
      %p174 = por %p172, %p173
      %p175 = scmp.ne.s32.totalorder %s166, %s167
      %p176 = scmp.eq.s32.totalorder %s25, 0
      %p177 = por %p175, %p176
      %p178 = scmp.ne.s32.totalorder %s166, %s167
      %p179 = scmp.eq.s32.totalorder %s26, 1
      %p180 = por %p178, %p179
      %p182 = scmp.ne.s32.totalorder %s167, %s181
      %p183 = scmp.eq.s32.totalorder %s26, 0
      %p184 = por %p182, %p183
      %s186 = sadd.s32 %s185, 1
      %p189 = scmp.eq.s32.totalorder %s20, 1
      %p190 = scmp.ne.s32.totalorder %s185, %s187
      %p191 = scmp.eq.s32.totalorder %s20, 0
      %p192 = por %p190, %p191
      %p193 = scmp.ne.s32.totalorder %s185, %s187
      %p194 = scmp.eq.s32.totalorder %s25, 1
      %p195 = por %p193, %p194
      %p196 = scmp.ne.s32.totalorder %s187, %s188
      %p197 = scmp.eq.s32.totalorder %s25, 0
      %p198 = por %p196, %p197
      %p199 = scmp.ne.s32.totalorder %s187, %s188
      %p200 = scmp.eq.s32.totalorder %s26, 1
      %p201 = por %p199, %p200
      %p203 = scmp.ne.s32.totalorder %s188, %s202
      %p204 = scmp.eq.s32.totalorder %s26, 0
      %p205 = por %p203, %p204
      %s207 = sadd.s32 %s206, 1
      %p210 = scmp.eq.s32.totalorder %s20, 1
      %p211 = scmp.ne.s32.totalorder %s206, %s208
      %p212 = scmp.eq.s32.totalorder %s20, 0
      %p213 = por %p211, %p212
      %p214 = scmp.ne.s32.totalorder %s206, %s208
      %p215 = scmp.eq.s32.totalorder %s25, 1
      %p216 = por %p214, %p215
      %p217 = scmp.ne.s32.totalorder %s208, %s209
      %p218 = scmp.eq.s32.totalorder %s25, 0
      %p219 = por %p217, %p218
      %p220 = scmp.ne.s32.totalorder %s208, %s209
      %p221 = scmp.eq.s32.totalorder %s26, 1
      %p222 = por %p220, %p221
      %p224 = scmp.ne.s32.totalorder %s209, %s223
      %p225 = scmp.eq.s32.totalorder %s26, 0
      %p226 = por %p224, %p225
      %s228 = sadd.s32 %s227, 1
      %p231 = scmp.eq.s32.totalorder %s20, 1
      %p232 = scmp.ne.s32.totalorder %s227, %s229
      %p233 = scmp.eq.s32.totalorder %s20, 0
      %p234 = por %p232, %p233
      %p235 = scmp.ne.s32.totalorder %s227, %s229
      %p236 = scmp.eq.s32.totalorder %s25, 1
      %p237 = por %p235, %p236
      %p238 = scmp.ne.s32.totalorder %s229, %s230
      %p239 = scmp.eq.s32.totalorder %s25, 0
      %p240 = por %p238, %p239
      %p241 = scmp.ne.s32.totalorder %s229, %s230
      %p242 = scmp.eq.s32.totalorder %s26, 1
      %p243 = por %p241, %p242
      %p245 = scmp.ne.s32.totalorder %s230, %s244
      %p246 = scmp.eq.s32.totalorder %s26, 0
      %p247 = por %p245, %p246
      %s249 = sadd.s32 %s248, 1
      %p252 = scmp.eq.s32.totalorder %s20, 1
      %p253 = scmp.ne.s32.totalorder %s248, %s250
      %p254 = scmp.eq.s32.totalorder %s20, 0
      %p255 = por %p253, %p254
      %p256 = scmp.ne.s32.totalorder %s248, %s250
      %p257 = scmp.eq.s32.totalorder %s25, 1
      %p258 = por %p256, %p257
      %p259 = scmp.ne.s32.totalorder %s250, %s251
      %p260 = scmp.eq.s32.totalorder %s25, 0
      %p261 = por %p259, %p260
      %p262 = scmp.ne.s32.totalorder %s250, %s251
      %p263 = scmp.eq.s32.totalorder %s26, 1
      %p264 = por %p262, %p263
      %p266 = scmp.ne.s32.totalorder %s251, %s265
      %p267 = scmp.eq.s32.totalorder %s26, 0
      %p268 = por %p266, %p267
      %s269 = ssub.s32 %s20, %s27
      %p270 = scmp.eq.s32.totalorder %s269, 0
      %s272 = sadd.s32 %s271, 1
      %s273 = scalar_select %p270, %s271, %s272
      %p276 = pneg %p270
      %p277 = scmp.eq.s32.totalorder %s20, 1
      %p278 = por %p276, %p277
      %p279 = scmp.ne.s32.totalorder %s271, %s274
      %p280 = scmp.eq.s32.totalorder %s20, 0
      %p281 = por %p279, %p280
      %p282 = scmp.ne.s32.totalorder %s271, %s274
      %p283 = scmp.eq.s32.totalorder %s25, 1
      %p284 = por %p282, %p283
      %p285 = scmp.ne.s32.totalorder %s274, %s275
      %p286 = scmp.eq.s32.totalorder %s25, 0
      %p287 = por %p285, %p286
      %p288 = scmp.ne.s32.totalorder %s274, %s275
      %p289 = scmp.eq.s32.totalorder %s26, 1
      %p290 = por %p288, %p289
      %p292 = scmp.ne.s32.totalorder %s275, %s291
      %p293 = scmp.eq.s32.totalorder %s26, 0
      %p294 = por %p292, %p293
      %p295 = scmp.le.s32.totalorder 1, %s20
      %p296 = scmp.lt.s32.totalorder %s20, 3
      %p297 = pnand %p295, %p296
      %p298 = pneg %p297
      // Predicated region
      $region9: #{tpu_custom_call.1} parent=5 // pred_check
        _
      $region10: #{tpu_custom_call.1} parent=5 // pred_check_branch
        %300 = sbr.rel (%p297) target = $region12
      $region11: #{tpu_custom_call.1} parent=5 // pred_region
        %s301 = ssub.s32 %s20, 1
        // Predicated region
        $region13: #{tpu_custom_call.1} parent=11 // pred_check
          %p302 = pneg %p93
        $region14: #{tpu_custom_call.1} parent=11 // pred_check_branch
          %304 = sbr.rel (%p302) target = $region16
        $region15: #{tpu_custom_call.1} parent=11 // pred_region
          _
        $region16: #{tpu_custom_call.1} parent=11 // pred_fallthru
          _
        // Predicated region
        $region17: #{tpu_custom_call.1} parent=11 // pred_check
          %p305 = pneg %p114
        $region18: #{tpu_custom_call.1} parent=11 // pred_check_branch
          %307 = sbr.rel (%p305) target = $region20
        $region19: #{tpu_custom_call.1} parent=11 // pred_region
          _
        $region20: #{tpu_custom_call.1} parent=11 // pred_fallthru
          _
        // Predicated region
        $region21: #{tpu_custom_call.1} parent=11 // pred_check
          %p308 = pneg %p135
        $region22: #{tpu_custom_call.1} parent=11 // pred_check_branch
          %310 = sbr.rel (%p308) target = $region24
        $region23: #{tpu_custom_call.1} parent=11 // pred_region
          _
        $region24: #{tpu_custom_call.1} parent=11 // pred_fallthru
          _
        // Predicated region
        $region25: #{tpu_custom_call.1} parent=11 // pred_check
          %p311 = pneg %p156
        $region26: #{tpu_custom_call.1} parent=11 // pred_check_branch
          %313 = sbr.rel (%p311) target = $region28
        $region27: #{tpu_custom_call.1} parent=11 // pred_region
          _
        $region28: #{tpu_custom_call.1} parent=11 // pred_fallthru
          _
        // Predicated region
        $region29: #{tpu_custom_call.1} parent=11 // pred_check
          %p314 = pneg %p177
        $region30: #{tpu_custom_call.1} parent=11 // pred_check_branch
          %316 = sbr.rel (%p314) target = $region32
        $region31: #{tpu_custom_call.1} parent=11 // pred_region
          _
        $region32: #{tpu_custom_call.1} parent=11 // pred_fallthru
          _
        // Predicated region
        $region33: #{tpu_custom_call.1} parent=11 // pred_check
          %p317 = pneg %p198
        $region34: #{tpu_custom_call.1} parent=11 // pred_check_branch
          %319 = sbr.rel (%p317) target = $region36
        $region35: #{tpu_custom_call.1} parent=11 // pred_region
          _
        $region36: #{tpu_custom_call.1} parent=11 // pred_fallthru
          _
        // Predicated region
        $region37: #{tpu_custom_call.1} parent=11 // pred_check
          %p320 = pneg %p219
        $region38: #{tpu_custom_call.1} parent=11 // pred_check_branch
          %322 = sbr.rel (%p320) target = $region40
        $region39: #{tpu_custom_call.1} parent=11 // pred_region
          _
        $region40: #{tpu_custom_call.1} parent=11 // pred_fallthru
          _
        // Predicated region
        $region41: #{tpu_custom_call.1} parent=11 // pred_check
          %p323 = pneg %p240
        $region42: #{tpu_custom_call.1} parent=11 // pred_check_branch
          %325 = sbr.rel (%p323) target = $region44
        $region43: #{tpu_custom_call.1} parent=11 // pred_region
          _
        $region44: #{tpu_custom_call.1} parent=11 // pred_fallthru
          _
        // Predicated region
        $region45: #{tpu_custom_call.1} parent=11 // pred_check
          %p326 = pneg %p261
        $region46: #{tpu_custom_call.1} parent=11 // pred_check_branch
          %328 = sbr.rel (%p326) target = $region48
        $region47: #{tpu_custom_call.1} parent=11 // pred_region
          _
        $region48: #{tpu_custom_call.1} parent=11 // pred_fallthru
          _
      $region12: #{tpu_custom_call.1} parent=5 // pred_fallthru
        _
      %p329 = scmp.lt.s32.totalorder %s20, 2
      // Predicated region
      $region49: #{tpu_custom_call.1} parent=5 // pred_check
        %p330 = pneg %p329
      $region50: #{tpu_custom_call.1} parent=5 // pred_check_branch
        %332 = sbr.rel (%p330) target = $region52
      $region51: #{tpu_custom_call.1} parent=5 // pred_region
        // Predicated region
        $region53: #{tpu_custom_call.1} parent=51 // pred_check
          %p333 = pneg %p40
        $region54: #{tpu_custom_call.1} parent=51 // pred_check_branch
          %335 = sbr.rel (%p333) target = $region56
        $region55: #{tpu_custom_call.1} parent=51 // pred_region
          %p336 = scmp.lt.s32.totalorder %s20, 1
          %s337 = scalar_select %p336, %s20, 1
          %s338 = smul.addr %s337, 4
          %s339 = scalar_lea.vmem %s0, %s338
        $region56: #{tpu_custom_call.1} parent=51 // pred_fallthru
          _
        // Predicated region
        $region57: #{tpu_custom_call.1} parent=51 // pred_check
          %p340 = pneg %p66
        $region58: #{tpu_custom_call.1} parent=51 // pred_check_branch
          %342 = sbr.rel (%p340) target = $region60
        $region59: #{tpu_custom_call.1} parent=51 // pred_region
          %p343 = scmp.lt.s32.totalorder %s20, 1
          %s344 = scalar_select %p343, %s20, 1
          %s345 = scalar_lea.vmem %s1, %s344
        $region60: #{tpu_custom_call.1} parent=51 // pred_fallthru
          _
      $region52: #{tpu_custom_call.1} parent=5 // pred_fallthru
        _
      %p346 = scmp.le.s32.totalorder 1, %s20
      %p347 = scmp.lt.s32.totalorder %s20, 3
      %p348 = pnand %p346, %p347
      %p349 = pneg %p348
      // Predicated region
      $region61: #{tpu_custom_call.1} parent=5 // pred_check
        _
      $region62: #{tpu_custom_call.1} parent=5 // pred_check_branch
        %351 = sbr.rel (%p348) target = $region64
      $region63: #{tpu_custom_call.1} parent=5 // pred_region
        %s352 = ssub.s32 %s20, 1
        %p353 = scmp.lt.s32.totalorder %s25, 1
        %s354 = scalar_select %p353, %s25, 1
        %s355 = smul.addr %s354, 4
        %s356 = scalar_lea.vmem %s0, %s355
        %p357 = pneg %p46
        %p358 = pneg %p43
        %p359 = scmp.lt.s32.totalorder %s25, 1
        %s360 = scalar_select %p359, %s25, 1
        %s361 = scalar_lea.vmem %s1, %s360
        %p362 = pneg %p72
        %p363 = pneg %p69
        %p364 = pneg %p93
        %p365 = pneg %p90
        %p366 = pneg %p114
        %p367 = pneg %p111
        %p368 = pneg %p135
        %p369 = pneg %p132
        %p370 = pneg %p156
        %p371 = pneg %p153
        %p372 = pneg %p177
        %p373 = pneg %p174
        %p374 = pneg %p198
        %p375 = pneg %p195
        %p376 = pneg %p219
        %p377 = pneg %p216
        %p378 = pneg %p240
        %p379 = pneg %p237
        %p380 = pneg %p261
        %p381 = pneg %p258
        %p382 = pneg %p287
        %p383 = pneg %p284
        %s384 = sand.u32 %s274, 1
        %s385 = scalar_lea.sflag [#allocation3], %s384
        %s386 = sand.u32 %s274, 1
        %s387 = smul.addr %s386, 8
        %s388 = scalar_lea.vmem [#allocation2], %s387
        %p389 = scmp.lt.s32.totalorder %s25, 1
        %s390 = scalar_select %p389, %s25, 1
        %s391 = smul.addr %s390, 4
        %s392 = scalar_lea.vmem %s0, %s391
        %p393 = scmp.lt.s32.totalorder %s25, 1
        %s394 = scalar_select %p393, %s25, 1
        %s395 = scalar_lea.vmem %s1, %s394
        %v396 = vld [vmem:[%s2] sm:$0xf]
        %v397 = vld [vmem:[%s3] sm:$0xf]
        %v398 = vld [vmem:[%s5] sm:$0xff]
        %v399 = vld [vmem:[%s6] sm:$0xff]
        %v400 = vld [vmem:[%s4] sm:$0xff]
        %v401 = vld [vmem:[%s4 + $0x8] sm:$0xff]
        %v402 = vld [vmem:[%s4 + $0x10] sm:$0xff]
        %v403 = vld [vmem:[%s7] sm:$0xff]
        %v404 = vld [vmem:[%s7 + $0x8] sm:$0xff]
        %v405 = vld [vmem:[%s7 + $0x10] sm:$0xff]
        %v406 = vld [vmem:[%s8] sm:$0xff]
        %v407 = vld [vmem:[%s9] sm:$0xff]
        %v408 = vld [vmem:[%s10] sm:$0xff]
        %v409 = vld [vmem:[%s392] sm:$0xf]
        %v410 = vld [vmem:[%s395] sm:$0x1]
        %vm411 = vcmask 1043456
        %v412 = vsel %vm411, %v409, 0.0
        %413 = vadd.xlane.f32.xlu0 %v412
        %v414 = vpop.xlane.xlu0 %413
        %v415 = vrot.slane %v414, 4
        %v416 = vadd.f32 %v414, %v415
        %v417 = vrot.slane %v416, 2
        %v418 = vadd.f32 %v416, %v417
        %v419 = vrot.slane %v418, 1
        %v420 = vadd.f32 %v418, %v419
        %s421 = vtos %v420
        %v422 = vstv %s421
        %v423 = vmul.f32 %v409, %v409
        %v424 = vsel %vm411, %v423, 0.0
        %425 = vadd.xlane.f32.xlu0 %v424
        %v426 = vpop.xlane.xlu0 %425
        %v427 = vrot.slane %v426, 4
        %v428 = vadd.f32 %v426, %v427
        %v429 = vrot.slane %v428, 2
        %v430 = vadd.f32 %v428, %v429
        %v431 = vrot.slane %v430, 1
        %v432 = vadd.f32 %v430, %v431
        %s433 = vtos %v432
        %v434 = vstv %s433
        %vm435 = vcmask 1040384
        %v436 = vsel %vm435, %v410, 0.0
        %437 = vadd.xlane.f32.xlu0 %v436
        %v438 = vpop.xlane.xlu0 %437
        %v439 = vrot.slane %v438, 4
        %v440 = vadd.f32 %v438, %v439
        %v441 = vrot.slane %v440, 2
        %v442 = vadd.f32 %v440, %v441
        %v443 = vrot.slane %v442, 1
        %v444 = vadd.f32 %v442, %v443
        %s445 = vtos %v444
        %v446 = vstv %s445
        %v447 = vmul.f32 %v446, 4.0
        %v448 = vrcp.pop %v447
        %v449 = vmul.f32 %v422, %v448
        %v450 = vmul.f32 %v434, %v448
        %v451 = vmul.f32 %v449, %v449
        %v452 = vsub.f32 %v450, %v451
        %v453 = vmax.f32 %v452, 1e-05
        %v454 = vrsqrt.pop %v453
        %v455 = vmul.f32 %v396, %v454
        %v456 = vsub.f32 %v409, %v449
        %458 = vset.pattern.permute.xlu0 0
        %459 = vperm.xlu0 %458, %v455
        %v460 = vpop.permute.xlu0 %459
        %v462 = vmul.f32 %v456, %v460
        %464 = vset.pattern.permute.xlu0 0
        %465 = vperm.xlu0 %464, %v397
        %v466 = vpop.permute.xlu0 %465
        %v468 = vadd.f32 %v462, %v466
        %v470 = vlaneseq
        %v471 = vshrl.u32 %v470, 7
        %v472 = vsub.s32 0, %v471
        %v473 = vrot.slane %v410, %v472
        %v475 = vmul.f32 %v473, %v468
        %v476 = vsub.f32 0.0, %v475
        %v477 = vmul.f32 %v476, 1.442695
        %v478 = vpow.pop %v477
        %v479 = vadd.f32 %v478, 1.0
        %v480 = vrcp.pop %v479
        %v481 = vmul.f32 1.0, %v480
        %v482 = vmul.f32 %v475, %v481
        %vm483 = vcmask 31744
        %v485 = vsel %vm483, %v400, 0
        %v488 = vsel %vm483, %v401, 0
        %v491 = vsel %vm483, %v402, 0
        %v494 = vsel %vm411, %v482, 0
        %496 = vmatprep.subr.mxu0 0.0
        %497 = vmatpush1.msra.mxu0 0.0
        %498 = vmatprep.subr.mxu0 0.0
        %499 = vmatpush1.msra.mxu0 0.0
        %500 = vmatprep.subr.mxu0 0.0
        %501 = vmatpush1.msra.mxu0 0.0
        %502 = vmatprep.subr.mxu0 0.0
        %503 = vmatpush1.msra.mxu0 0.0
        %504 = vmatprep.subr.mxu0 0.0
        %505 = vmatpush1.msra.mxu0 0.0
        %506 = vmatprep.subr.mxu0 0.0
        %507 = vmatpush1.msra.mxu0 0.0
        %508 = vmatprep.subr.mxu0 0.0
        %509 = vmatpush1.msra.mxu0 0.0
        %510 = vmatprep.subr.mxu0 0.0
        %511 = vmatpush1.msra.mxu0 0.0
        %512 = vmatprep.subr.mxu0 0.0
        %513 = vmatpush1.msra.mxu0 0.0
        %514 = vmatprep.subr.mxu0 0.0
        %515 = vmatpush1.msra.mxu0 0.0
        %516 = vmatprep.subr.mxu0 0.0
        %517 = vmatpush1.msra.mxu0 0.0
        %518 = vmatprep.subr.mxu0 0.0
        %519 = vmatpush1.msra.mxu0 0.0
        %520 = vmatprep.subr.mxu0 0.0
        %521 = vmatpush1.msra.mxu0 0.0
        %522 = vmatprep.subr.mxu0 0.0
        %523 = vmatpush1.msra.mxu0 0.0
        %524 = vmatprep.subr.mxu0 0.0
        %525 = vmatpush1.msra.mxu0 0.0
        %526 = vmatprep.subr.mxu0 0.0
        %527 = vmatpush1.msra.mxu0 %v494
        %528 = vmatprep.subr.mxu0 0.0
        %529 = vmatpush2.msra.mxu0 0.0
        %530 = vmatprep.subr.mxu0 0.0
        %531 = vmatpush2.msra.mxu0 0.0
        %532 = vmatprep.subr.mxu0 0.0
        %533 = vmatpush2.msra.mxu0 0.0
        %534 = vmatprep.subr.mxu0 0.0
        %535 = vmatpush2.msra.mxu0 0.0
        %536 = vmatprep.subr.mxu0 0.0
        %537 = vmatpush2.msra.mxu0 0.0
        %538 = vmatprep.subr.mxu0 0.0
        %539 = vmatpush2.msra.mxu0 0.0
        %540 = vmatprep.subr.mxu0 0.0
        %541 = vmatpush2.msra.mxu0 0.0
        %542 = vmatprep.subr.mxu0 0.0
        %543 = vmatpush2.msra.mxu0 0.0
        %544 = vmatprep.subr.mxu0 0.0
        %545 = vmatpush2.msra.mxu0 0.0
        %546 = vmatprep.subr.mxu0 0.0
        %547 = vmatpush2.msra.mxu0 0.0
        %548 = vmatprep.subr.mxu0 0.0
        %549 = vmatpush2.msra.mxu0 0.0
        %550 = vmatprep.subr.mxu0 0.0
        %551 = vmatpush2.msra.mxu0 0.0
        %552 = vmatprep.subr.mxu0 0.0
        %553 = vmatpush2.msra.mxu0 0.0
        %554 = vmatprep.subr.mxu0 0.0
        %555 = vmatpush2.msra.mxu0 0.0
        %556 = vmatprep.subr.mxu0 0.0
        %557 = vmatpush2.msra.mxu0 0.0
        %558 = vmatprep.subr.mxu0 0.0
        %559 = vmatpush2.msra.mxu0 0.0
        %560 = vmatprep.mubr.f32.mxu0 0.0
        %561 = vmatmul.mubr.f32.gmra.mxu0 %v485
        %v562 = vpop.f32.mrf.mxu0
        %v563 = vadd.f32 0.0, %v562
        %v564 = vpop.f32.mrf.mxu0
        %565 = vmatprep.mubr.f32.mxu0 0.0
        %566 = vmatmul.mubr.f32.gmra.mxu0 %v488
        %v567 = vpop.f32.mrf.mxu0
        %v568 = vadd.f32 0.0, %v567
        %v569 = vpop.f32.mrf.mxu0
        %570 = vmatprep.mubr.f32.mxu0 0.0
        %571 = vmatmul.mubr.f32.gmra.mxu0 %v491
        %v572 = vpop.f32.mrf.mxu0
        %v573 = vadd.f32 0.0, %v572
        %v574 = vpop.f32.mrf.mxu0
        %575 = vdwg.mxu0
        %577 = vrot.lane.b32.xlu0 %v563, 1
        %v578 = vpop.permute.xlu0 %577
        %vm580 = vcmask 7168
        %v581 = vsel %vm580, 0.0, %v578
        %v582 = vadd.f32 %v581, %v568
        %584 = vrot.lane.b32.xlu0 %v573, 127
        %v585 = vpop.permute.xlu0 %584
        %vm587 = vcmask 1039360
        %v588 = vsel %vm587, %v585, 0.0
        %v589 = vadd.f32 %v582, %v588
        %v590 = vmul.f32 %v473, %v589
        %591 = vadd.xlane.f32.xlu0 %v590
        %v592 = vpop.xlane.xlu0 %591
        %v593 = vrot.slane %v592, 4
        %v594 = vadd.f32 %v592, %v593
        %v595 = vrot.slane %v594, 2
        %v596 = vadd.f32 %v594, %v595
        %v597 = vrot.slane %v596, 1
        %v598 = vadd.f32 %v596, %v597
        %s599 = vtos %v598
        %v600 = vstv %s599
        %v601 = vmul.f32 %v590, %v590
        %602 = vadd.xlane.f32.xlu0 %v601
        %v603 = vpop.xlane.xlu0 %602
        %v604 = vrot.slane %v603, 4
        %v605 = vadd.f32 %v603, %v604
        %v606 = vrot.slane %v605, 2
        %v607 = vadd.f32 %v605, %v606
        %v608 = vrot.slane %v607, 1
        %v609 = vadd.f32 %v607, %v608
        %s610 = vtos %v609
        %v611 = vstv %s610
        %v612 = vmul.f32 %v446, 8.0
        %v613 = vrcp.pop %v612
        %v614 = vmul.f32 %v600, %v613
        %v615 = vmul.f32 %v611, %v613
        %v616 = vmul.f32 %v614, %v614
        %v617 = vsub.f32 %v615, %v616
        %v618 = vmax.f32 %v617, 1e-05
        %v619 = vrsqrt.pop %v618
        %v620 = vmul.f32 %v398, %v619
        %v621 = vsub.f32 %v590, %v614
        %623 = vset.pattern.permute.xlu0 0
        %624 = vperm.xlu0 %623, %v620
        %v625 = vpop.permute.xlu0 %624
        %v627 = vmul.f32 %v621, %v625
        %629 = vset.pattern.permute.xlu0 0
        %630 = vperm.xlu0 %629, %v399
        %v631 = vpop.permute.xlu0 %630
        %v633 = vadd.f32 %v627, %v631
        %v634 = vmul.f32 %v473, %v633
        %v635 = vsub.f32 0.0, %v634
        %v636 = vmul.f32 %v635, 1.442695
        %v637 = vpow.pop %v636
        %v638 = vadd.f32 %v637, 1.0
        %v639 = vrcp.pop %v638
        %v640 = vmul.f32 1.0, %v639
        %v641 = vmul.f32 %v634, %v640
        %vm642 = vcmask 64512
        %v644 = vsel %vm642, %v403, 0
        %v647 = vsel %vm642, %v404, 0
        %v650 = vsel %vm642, %v405, 0
        %652 = vmatprep.subr.mxu0 0.0
        %653 = vmatpush1.msra.mxu0 0.0
        %654 = vmatprep.subr.mxu0 0.0
        %655 = vmatpush1.msra.mxu0 0.0
        %656 = vmatprep.subr.mxu0 0.0
        %657 = vmatpush1.msra.mxu0 0.0
        %658 = vmatprep.subr.mxu0 0.0
        %659 = vmatpush1.msra.mxu0 0.0
        %660 = vmatprep.subr.mxu0 0.0
        %661 = vmatpush1.msra.mxu0 0.0
        %662 = vmatprep.subr.mxu0 0.0
        %663 = vmatpush1.msra.mxu0 0.0
        %664 = vmatprep.subr.mxu0 0.0
        %665 = vmatpush1.msra.mxu0 0.0
        %666 = vmatprep.subr.mxu0 0.0
        %667 = vmatpush1.msra.mxu0 0.0
        %668 = vmatprep.subr.mxu0 0.0
        %669 = vmatpush1.msra.mxu0 0.0
        %670 = vmatprep.subr.mxu0 0.0
        %671 = vmatpush1.msra.mxu0 0.0
        %672 = vmatprep.subr.mxu0 0.0
        %673 = vmatpush1.msra.mxu0 0.0
        %674 = vmatprep.subr.mxu0 0.0
        %675 = vmatpush1.msra.mxu0 0.0
        %676 = vmatprep.subr.mxu0 0.0
        %677 = vmatpush1.msra.mxu0 0.0
        %678 = vmatprep.subr.mxu0 0.0
        %679 = vmatpush1.msra.mxu0 0.0
        %680 = vmatprep.subr.mxu0 0.0
        %681 = vmatpush1.msra.mxu0 0.0
        %682 = vmatprep.subr.mxu0 0.0
        %683 = vmatpush1.msra.mxu0 %v641
        %684 = vmatprep.subr.mxu0 0.0
        %685 = vmatpush2.msra.mxu0 0.0
        %686 = vmatprep.subr.mxu0 0.0
        %687 = vmatpush2.msra.mxu0 0.0
        %688 = vmatprep.subr.mxu0 0.0
        %689 = vmatpush2.msra.mxu0 0.0
        %690 = vmatprep.subr.mxu0 0.0
        %691 = vmatpush2.msra.mxu0 0.0
        %692 = vmatprep.subr.mxu0 0.0
        %693 = vmatpush2.msra.mxu0 0.0
        %694 = vmatprep.subr.mxu0 0.0
        %695 = vmatpush2.msra.mxu0 0.0
        %696 = vmatprep.subr.mxu0 0.0
        %697 = vmatpush2.msra.mxu0 0.0
        %698 = vmatprep.subr.mxu0 0.0
        %699 = vmatpush2.msra.mxu0 0.0
        %700 = vmatprep.subr.mxu0 0.0
        %701 = vmatpush2.msra.mxu0 0.0
        %702 = vmatprep.subr.mxu0 0.0
        %703 = vmatpush2.msra.mxu0 0.0
        %704 = vmatprep.subr.mxu0 0.0
        %705 = vmatpush2.msra.mxu0 0.0
        %706 = vmatprep.subr.mxu0 0.0
        %707 = vmatpush2.msra.mxu0 0.0
        %708 = vmatprep.subr.mxu0 0.0
        %709 = vmatpush2.msra.mxu0 0.0
        %710 = vmatprep.subr.mxu0 0.0
        %711 = vmatpush2.msra.mxu0 0.0
        %712 = vmatprep.subr.mxu0 0.0
        %713 = vmatpush2.msra.mxu0 0.0
        %714 = vmatprep.subr.mxu0 0.0
        %715 = vmatpush2.msra.mxu0 0.0
        %716 = vmatprep.mubr.f32.mxu0 0.0
        %717 = vmatmul.mubr.f32.gmra.mxu0 %v644
        %v718 = vpop.f32.mrf.mxu0
        %v719 = vadd.f32 0.0, %v718
        %v720 = vpop.f32.mrf.mxu0
        %721 = vmatprep.mubr.f32.mxu0 0.0
        %722 = vmatmul.mubr.f32.gmra.mxu0 %v647
        %v723 = vpop.f32.mrf.mxu0
        %v724 = vadd.f32 0.0, %v723
        %v725 = vpop.f32.mrf.mxu0
        %726 = vmatprep.mubr.f32.mxu0 0.0
        %727 = vmatmul.mubr.f32.gmra.mxu0 %v650
        %v728 = vpop.f32.mrf.mxu0
        %v729 = vadd.f32 0.0, %v728
        %v730 = vpop.f32.mrf.mxu0
        %731 = vdwg.mxu0
        %733 = vrot.lane.b32.xlu0 %v719, 1
        %v734 = vpop.permute.xlu0 %733
        %v736 = vsel %vm580, 0.0, %v734
        %v737 = vadd.f32 %v736, %v724
        %739 = vrot.lane.b32.xlu0 %v729, 127
        %v740 = vpop.permute.xlu0 %739
        %v742 = vsel %vm587, %v740, 0.0
        %v743 = vadd.f32 %v737, %v742
        %745 = vset.pattern.permute.xlu0 0
        %746 = vperm.xlu0 %745, %v406
        %v747 = vpop.permute.xlu0 %746
        %v749 = vadd.f32 %v743, %v747
        %751 = vset.pattern.permute.xlu0 0
        %752 = vperm.xlu0 %751, %v408
        %v753 = vpop.permute.xlu0 %752
        %v756 = vsel %vm483, %v407, 0
        %v759 = vsel %vm411, %v409, 0
        %761 = vmatprep.subr.mxu0 0.0
        %762 = vmatpush1.msra.mxu0 0.0
        %763 = vmatprep.subr.mxu0 0.0
        %764 = vmatpush1.msra.mxu0 0.0
        %765 = vmatprep.subr.mxu0 0.0
        %766 = vmatpush1.msra.mxu0 0.0
        %767 = vmatprep.subr.mxu0 0.0
        %768 = vmatpush1.msra.mxu0 0.0
        %769 = vmatprep.subr.mxu0 0.0
        %770 = vmatpush1.msra.mxu0 0.0
        %771 = vmatprep.subr.mxu0 0.0
        %772 = vmatpush1.msra.mxu0 0.0
        %773 = vmatprep.subr.mxu0 0.0
        %774 = vmatpush1.msra.mxu0 0.0
        %775 = vmatprep.subr.mxu0 0.0
        %776 = vmatpush1.msra.mxu0 0.0
        %777 = vmatprep.subr.mxu0 0.0
        %778 = vmatpush1.msra.mxu0 0.0
        %779 = vmatprep.subr.mxu0 0.0
        %780 = vmatpush1.msra.mxu0 0.0
        %781 = vmatprep.subr.mxu0 0.0
        %782 = vmatpush1.msra.mxu0 0.0
        %783 = vmatprep.subr.mxu0 0.0
        %784 = vmatpush1.msra.mxu0 0.0
        %785 = vmatprep.subr.mxu0 0.0
        %786 = vmatpush1.msra.mxu0 0.0
        %787 = vmatprep.subr.mxu0 0.0
        %788 = vmatpush1.msra.mxu0 0.0
        %789 = vmatprep.subr.mxu0 0.0
        %790 = vmatpush1.msra.mxu0 0.0
        %791 = vmatprep.subr.mxu0 0.0
        %792 = vmatpush1.msra.mxu0 %v759
        %793 = vmatprep.subr.mxu0 0.0
        %794 = vmatpush2.msra.mxu0 0.0
        %795 = vmatprep.subr.mxu0 0.0
        %796 = vmatpush2.msra.mxu0 0.0
        %797 = vmatprep.subr.mxu0 0.0
        %798 = vmatpush2.msra.mxu0 0.0
        %799 = vmatprep.subr.mxu0 0.0
        %800 = vmatpush2.msra.mxu0 0.0
        %801 = vmatprep.subr.mxu0 0.0
        %802 = vmatpush2.msra.mxu0 0.0
        %803 = vmatprep.subr.mxu0 0.0
        %804 = vmatpush2.msra.mxu0 0.0
        %805 = vmatprep.subr.mxu0 0.0
        %806 = vmatpush2.msra.mxu0 0.0
        %807 = vmatprep.subr.mxu0 0.0
        %808 = vmatpush2.msra.mxu0 0.0
        %809 = vmatprep.subr.mxu0 0.0
        %810 = vmatpush2.msra.mxu0 0.0
        %811 = vmatprep.subr.mxu0 0.0
        %812 = vmatpush2.msra.mxu0 0.0
        %813 = vmatprep.subr.mxu0 0.0
        %814 = vmatpush2.msra.mxu0 0.0
        %815 = vmatprep.subr.mxu0 0.0
        %816 = vmatpush2.msra.mxu0 0.0
        %817 = vmatprep.subr.mxu0 0.0
        %818 = vmatpush2.msra.mxu0 0.0
        %819 = vmatprep.subr.mxu0 0.0
        %820 = vmatpush2.msra.mxu0 0.0
        %821 = vmatprep.subr.mxu0 0.0
        %822 = vmatpush2.msra.mxu0 0.0
        %823 = vmatprep.subr.mxu0 0.0
        %824 = vmatpush2.msra.mxu0 0.0
        %825 = vmatprep.mubr.f32.mxu0 0.0
        %826 = vmatmul.mubr.f32.gmra.mxu0 %v756
        %v827 = vpop.f32.mrf.mxu0
        %v828 = vadd.f32 %v753, %v827
        %v829 = vpop.f32.mrf.mxu0
        %830 = vdwg.mxu0
        %v831 = vadd.f32 %v749, %v828
        %v832 = vmul.f32 %v473, %v831
        %833 = vst [vmem:[%s388] sm:$0xff] %v832
        %s834 = sand.u32 %s274, 1
        %s835 = scalar_lea.sflag [#allocation3], %s834
        %s836 = sand.u32 %s274, 1
        %s837 = smul.addr %s836, 8
        %s838 = scalar_lea.vmem [#allocation2], %s837
        // Predicated region
        $region65: #{tpu_custom_call.1} parent=63 // pred_check
          %p839 = pneg %p284
        $region66: #{tpu_custom_call.1} parent=63 // pred_check_branch
          %841 = sbr.rel (%p839) target = $region68
        $region67: #{tpu_custom_call.1} parent=63 // pred_region
          %s843 = ssub.s32 128, 128
          %844 = vsyncadd %s835, %s843
          %s845 = smul.addr %s25, 128
          %s846 = scalar_lea.hbm %s11, %s845
          %s848 = sshll.u32 %s838, 4
          %s849 = int_to_ptr.vmem [resolvable:$true] %s848
          %851 = dma.vmem_to_hbm [thread:$0]  %s849, 128, %s846, %s835
        $region68: #{tpu_custom_call.1} parent=63 // pred_fallthru
          _
      $region64: #{tpu_custom_call.1} parent=5 // pred_fallthru
        _
      %p852 = scmp.le.s32.totalorder 2, %s20
      // Predicated region
      $region69: #{tpu_custom_call.1} parent=5 // pred_check
        %p853 = pneg %p852
      $region70: #{tpu_custom_call.1} parent=5 // pred_check_branch
        %855 = sbr.rel (%p853) target = $region72
      $region71: #{tpu_custom_call.1} parent=5 // pred_region
        %s856 = ssub.s32 %s20, 2
        // Predicated region
        $region73: #{tpu_custom_call.1} parent=71 // pred_check
          %p857 = pneg %p290
        $region74: #{tpu_custom_call.1} parent=71 // pred_check_branch
          %859 = sbr.rel (%p857) target = $region76
        $region75: #{tpu_custom_call.1} parent=71 // pred_region
          %s860 = sand.u32 %s275, 1
          %s861 = scalar_lea.sflag [#allocation3], %s860
          %s862 = sand.u32 %s275, 1
          %s863 = smul.addr %s862, 8
          %s864 = scalar_lea.vmem [#allocation2], %s863
          %865 = dma.done %s861, 128
        $region76: #{tpu_custom_call.1} parent=71 // pred_fallthru
          _
      $region72: #{tpu_custom_call.1} parent=5 // pred_fallthru
        _
    $region6: #{tpu_custom_call.1} parent=1 // loop_footer
      %s24 = sadd.s32 1, %s20
    $region7: #{tpu_custom_call.1} parent=1 // loop_footer_branch
      %19 = sbr.rel target = $region3
    $region8: #{tpu_custom_call.1} parent=1 // loop_exit
      _
    %866 = vsyncpa [#allocation3], 1
    %s867 = scalar_lea.sflag [#allocation3], 1
    %868 = vsyncpa %s867, 1

</llo_original>
